<compile_context>
chip_gen: v7x
topology: tpu7x:2x2x1
jax: 0.10.0
libtpu: 0.0.40
codegen_flags: <defaults>
</compile_context>

<pallas_src>
import jax
import jax.numpy as jnp
import numpy as np
from jax import lax
from jax.experimental import pallas as pl
from jax.experimental.pallas import tpu as pltpu

MAX_DEGREE = 4  # module default is 1; use 4 here so scales = [1, 2, 4, 8]


def _make_ise_kernel(max_degree):
    deg = max_degree

    def ise_kernel(vec_ref, kappa_ref, out_ref):
        # Every operand below is a full (8, bn) tile: all 8 sublanes live.
        a = vec_ref[0:8, :]
        b = vec_ref[8:16, :]
        c = vec_ref[16:24, :]
        kappa = kappa_ref[...]

        # sin/cos(phi) seeds without atan2:
        #   sin(atan2(b, a)) = b / hypot(a, b), cos(atan2(b, a)) = a / hypot(a, b)
        # with the a=b=0 corner matching atan2(0, 0) = 0 -> (sin, cos) = (0, 1).
        r2 = a * a + b * b
        degenerate = r2 == 0.0
        inv_r = lax.rsqrt(jnp.where(degenerate, 1.0, r2))
        s = jnp.where(degenerate, 0.0, b * inv_r)
        co = jnp.where(degenerate, 1.0, a * inv_r)

        # roughness = 1 / (kappa^2 + 1e-8): approx reciprocal (EUP) + one Newton step.
        den = kappa * kappa + 1e-8
        inv0 = pl.reciprocal(den, approx=True)
        roughness = inv0 * (2.0 - den * inv0)

        c2 = c * c
        c4 = c2 * c2
        neg_half_rough = -0.5 * roughness

        for k in range(deg):
            scale = float(2 ** k)
            falloff = jnp.exp((-scale) * c4)                  # exp(-2^k * c^4)
            gk = jnp.exp((scale * scale) * neg_half_rough)    # exp(-0.5*rough*4^k)
            mul = falloff * gk
            out_ref[8 * k:8 * (k + 1), :] = mul * s
            out_ref[8 * (deg + k):8 * (deg + k + 1), :] = mul * co
            if k + 1 < deg:
                # sin/cos(2^(k+1) * phi) via the double-angle recurrence.
                s, co = 2.0 * s * co, co * co - s * s

    return ise_kernel


def phi_ise_hack(vec, kappa, max_degree=MAX_DEGREE, block_lanes=8192):
    """Pallas-TPU forward of PhiISEHack. Returns [sin, cos], each (N, max_degree)."""
    n = vec.shape[0]
    d = max_degree
    kappa = kappa.reshape(n)

    # Packed layout: row i -> (sublane i // m, lane i % m), with n_pad = 8 * m.
    # m (lane count) is a multiple of 128 and of the per-block lane count bn.
    lanes = max(128, pl.cdiv(n, 8 * 128) * 128)
    num_blocks = max(1, pl.cdiv(lanes, block_lanes))
    bn = pl.cdiv(pl.cdiv(lanes, num_blocks), 128) * 128
    m = num_blocks * bn
    n_pad = 8 * m

    vec_f = vec.astype(jnp.float32)
    kappa_f = kappa.astype(jnp.float32)
    if n_pad != n:
        vec_f = jnp.pad(vec_f, ((0, n_pad - n), (0, 0)))
        kappa_f = jnp.pad(kappa_f, ((0, n_pad - n),))

    vec_packed = vec_f.T.reshape(3 * 8, m)    # (24, m): component-major, 8 sublanes each
    kappa_packed = kappa_f.reshape(8, m)      # (8,  m)

    out = pl.pallas_call(
        _make_ise_kernel(d),
        out_shape=jax.ShapeDtypeStruct((2 * d * 8, m), jnp.float32),
        grid_spec=pltpu.PrefetchScalarGridSpec(
            num_scalar_prefetch=0,
            grid=(num_blocks,),
            in_specs=[
                pl.BlockSpec((3 * 8, bn), lambda i: (0, i)),   # packed vec tile
                pl.BlockSpec((8, bn), lambda i: (0, i)),       # packed kappa tile
            ],
            out_specs=pl.BlockSpec((2 * d * 8, bn), lambda i: (0, i)),  # fused sin|cos slab
        ),
        compiler_params=pltpu.CompilerParams(
            dimension_semantics=("parallel",)),
    )(vec_packed, kappa_packed)

    # Unpack the fused (2*D*8, m) slab back to the module's [N, D] outputs.
    # TODO(synk): downstream consumers could take the (2, d, N) slab directly and
    # skip these transposes (pure layout plumbing that dominates end-to-end HBM
    # traffic once the kernel itself runs at the roofline).
    out = out.reshape(2, d, n_pad)[:, :, :n]
    return [out[0].T, out[1].T]


def phi_ise_ref(vec, kappa, max_degree=MAX_DEGREE):
    """Pure-JAX reference mirroring the PyTorch forward exactly."""
    scales = (2.0 ** jnp.arange(max_degree, dtype=jnp.float32))[None, :]
    a, b, c = vec[:, 0:1], vec[:, 1:2], vec[:, 2:3]
    phi = jnp.arctan2(b, a)
    roughness = 1.0 / (kappa ** 2 + 1e-8)
    falloff = jnp.exp(-scales * c ** 4)
    shape = list(phi.shape[:-1]) + [-1]
    y = jnp.reshape(phi[..., None] * scales, shape)
    mul = jnp.exp(-0.5 * roughness.reshape(-1, 1) * scales ** 2) * falloff
    return [mul * jnp.sin(y), mul * jnp.cos(y)]


if __name__ == "__main__":
    key = jax.random.PRNGKey(0)
    k1, k2 = jax.random.split(key)
    N = 128
    vec = jax.random.normal(k1, (N, 3), dtype=jnp.float32)
    kappa = jax.random.uniform(k2, (N,), dtype=jnp.float32, minval=0.1, maxval=2.0)

    sin_o, cos_o = phi_ise_hack(vec, kappa)
    jax.block_until_ready((sin_o, cos_o))

    sin_r, cos_r = phi_ise_ref(vec, kappa.reshape(N, 1))
    assert sin_o.shape == (N, MAX_DEGREE) and cos_o.shape == (N, MAX_DEGREE)
    assert np.allclose(np.asarray(sin_o), np.asarray(sin_r), atol=1e-4, rtol=1e-4)
    assert np.allclose(np.asarray(cos_o), np.asarray(cos_r), atol=1e-4, rtol=1e-4)
    print("KERNEL_OK")
</pallas_src>

<mosaic_0001>
module attributes {stable_mosaic.version = 11 : i64} {
  func.func @ise_kernel(%arg0: i32, %arg1: memref<24x128xf32, #tpu.memory_space<vmem>>, %arg2: memref<8x128xf32, #tpu.memory_space<vmem>>, %arg3: memref<64x128xf32, #tpu.memory_space<vmem>>) attributes {dimension_semantics = [#tpu.dimension_semantics<parallel>], iteration_bounds = array<i64: 1>, scalar_prefetch = 0 : i64, scratch_operands = 0 : i64, tpu.core_type = #tpu.core_type<tc>, window_params = [{transform_indices = @transform_0, window_bounds = array<i64: 24, 128>}, {transform_indices = @transform_1, window_bounds = array<i64: 8, 128>}, {transform_indices = @transform_2, window_bounds = array<i64: 64, 128>}]} {
    %c0 = arith.constant 0 : index
    %c0_0 = arith.constant 0 : index
    %0 = vector.load %arg1[%c0, %c0_0] : memref<24x128xf32, #tpu.memory_space<vmem>>, vector<8x128xf32>
    %c8 = arith.constant 8 : index
    %c0_1 = arith.constant 0 : index
    %1 = vector.load %arg1[%c8, %c0_1] : memref<24x128xf32, #tpu.memory_space<vmem>>, vector<8x128xf32>
    %c16 = arith.constant 16 : index
    %c0_2 = arith.constant 0 : index
    %2 = vector.load %arg1[%c16, %c0_2] : memref<24x128xf32, #tpu.memory_space<vmem>>, vector<8x128xf32>
    %c0_3 = arith.constant 0 : index
    %c0_4 = arith.constant 0 : index
    %3 = vector.load %arg2[%c0_3, %c0_4] : memref<8x128xf32, #tpu.memory_space<vmem>>, vector<8x128xf32>
    %4 = arith.mulf %0, %0 : vector<8x128xf32>
    %5 = arith.mulf %1, %1 : vector<8x128xf32>
    %6 = arith.addf %4, %5 : vector<8x128xf32>
    %cst = arith.constant 0.000000e+00 : f32
    %7 = vector.broadcast %cst : f32 to vector<8x128xf32>
    %8 = arith.cmpf oeq, %6, %7 : vector<8x128xf32>
    %cst_5 = arith.constant 1.000000e+00 : f32
    %9 = vector.broadcast %cst_5 : f32 to vector<8x128xf32>
    %10 = arith.select %8, %9, %6 : vector<8x128xi1>, vector<8x128xf32>
    %11 = math.rsqrt %10 : vector<8x128xf32>
    %12 = arith.mulf %1, %11 : vector<8x128xf32>
    %cst_6 = arith.constant 0.000000e+00 : f32
    %13 = vector.broadcast %cst_6 : f32 to vector<8x128xf32>
    %14 = arith.select %8, %13, %12 : vector<8x128xi1>, vector<8x128xf32>
    %15 = arith.mulf %0, %11 : vector<8x128xf32>
    %cst_7 = arith.constant 1.000000e+00 : f32
    %16 = vector.broadcast %cst_7 : f32 to vector<8x128xf32>
    %17 = arith.select %8, %16, %15 : vector<8x128xi1>, vector<8x128xf32>
    %18 = arith.mulf %3, %3 : vector<8x128xf32>
    %cst_8 = arith.constant 9.99999993E-9 : f32
    %19 = vector.broadcast %cst_8 : f32 to vector<8x128xf32>
    %20 = arith.addf %18, %19 : vector<8x128xf32>
    %21 = tpu.reciprocal %20 {approx = true} : vector<8x128xf32> -> vector<8x128xf32>
    %22 = arith.mulf %20, %21 : vector<8x128xf32>
    %cst_9 = arith.constant 2.000000e+00 : f32
    %23 = vector.broadcast %cst_9 : f32 to vector<8x128xf32>
    %24 = arith.subf %23, %22 : vector<8x128xf32>
    %25 = arith.mulf %21, %24 : vector<8x128xf32>
    %26 = arith.mulf %2, %2 : vector<8x128xf32>
    %27 = arith.mulf %26, %26 : vector<8x128xf32>
    %cst_10 = arith.constant -5.000000e-01 : f32
    %28 = vector.broadcast %cst_10 : f32 to vector<8x128xf32>
    %29 = arith.mulf %28, %25 : vector<8x128xf32>
    %cst_11 = arith.constant -1.000000e+00 : f32
    %30 = vector.broadcast %cst_11 : f32 to vector<8x128xf32>
    %31 = arith.mulf %30, %27 : vector<8x128xf32>
    %32 = math.exp %31 : vector<8x128xf32>
    %cst_12 = arith.constant 1.000000e+00 : f32
    %33 = vector.broadcast %cst_12 : f32 to vector<8x128xf32>
    %34 = arith.mulf %33, %29 : vector<8x128xf32>
    %35 = math.exp %34 : vector<8x128xf32>
    %36 = arith.mulf %32, %35 : vector<8x128xf32>
    %37 = arith.mulf %36, %14 : vector<8x128xf32>
    %c0_13 = arith.constant 0 : index
    %c0_14 = arith.constant 0 : index
    %38 = vector.load %arg3[%c0_13, %c0_14] : memref<64x128xf32, #tpu.memory_space<vmem>>, vector<8x128xf32>
    tpu.vector_store %arg3[%c0_13, %c0_14], %37 {strides = array<i32>} : memref<64x128xf32, #tpu.memory_space<vmem>>, vector<8x128xf32>,
    %39 = arith.mulf %36, %17 : vector<8x128xf32>
    %c32 = arith.constant 32 : index
    %c0_15 = arith.constant 0 : index
    %40 = vector.load %arg3[%c32, %c0_15] : memref<64x128xf32, #tpu.memory_space<vmem>>, vector<8x128xf32>
    tpu.vector_store %arg3[%c32, %c0_15], %39 {strides = array<i32>} : memref<64x128xf32, #tpu.memory_space<vmem>>, vector<8x128xf32>,
    %cst_16 = arith.constant 2.000000e+00 : f32
    %41 = vector.broadcast %cst_16 : f32 to vector<8x128xf32>
    %42 = arith.mulf %41, %14 : vector<8x128xf32>
    %43 = arith.mulf %42, %17 : vector<8x128xf32>
    %44 = arith.mulf %17, %17 : vector<8x128xf32>
    %45 = arith.mulf %14, %14 : vector<8x128xf32>
    %46 = arith.subf %44, %45 : vector<8x128xf32>
    %cst_17 = arith.constant -2.000000e+00 : f32
    %47 = vector.broadcast %cst_17 : f32 to vector<8x128xf32>
    %48 = arith.mulf %47, %27 : vector<8x128xf32>
    %49 = math.exp %48 : vector<8x128xf32>
    %cst_18 = arith.constant 4.000000e+00 : f32
    %50 = vector.broadcast %cst_18 : f32 to vector<8x128xf32>
    %51 = arith.mulf %50, %29 : vector<8x128xf32>
    %52 = math.exp %51 : vector<8x128xf32>
    %53 = arith.mulf %49, %52 : vector<8x128xf32>
    %54 = arith.mulf %53, %43 : vector<8x128xf32>
    %c8_19 = arith.constant 8 : index
    %c0_20 = arith.constant 0 : index
    %55 = vector.load %arg3[%c8_19, %c0_20] : memref<64x128xf32, #tpu.memory_space<vmem>>, vector<8x128xf32>
    tpu.vector_store %arg3[%c8_19, %c0_20], %54 {strides = array<i32>} : memref<64x128xf32, #tpu.memory_space<vmem>>, vector<8x128xf32>,
    %56 = arith.mulf %53, %46 : vector<8x128xf32>
    %c40 = arith.constant 40 : index
    %c0_21 = arith.constant 0 : index
    %57 = vector.load %arg3[%c40, %c0_21] : memref<64x128xf32, #tpu.memory_space<vmem>>, vector<8x128xf32>
    tpu.vector_store %arg3[%c40, %c0_21], %56 {strides = array<i32>} : memref<64x128xf32, #tpu.memory_space<vmem>>, vector<8x128xf32>,
    %cst_22 = arith.constant 2.000000e+00 : f32
    %58 = vector.broadcast %cst_22 : f32 to vector<8x128xf32>
    %59 = arith.mulf %58, %43 : vector<8x128xf32>
    %60 = arith.mulf %59, %46 : vector<8x128xf32>
    %61 = arith.mulf %46, %46 : vector<8x128xf32>
    %62 = arith.mulf %43, %43 : vector<8x128xf32>
    %63 = arith.subf %61, %62 : vector<8x128xf32>
    %cst_23 = arith.constant -4.000000e+00 : f32
    %64 = vector.broadcast %cst_23 : f32 to vector<8x128xf32>
    %65 = arith.mulf %64, %27 : vector<8x128xf32>
    %66 = math.exp %65 : vector<8x128xf32>
    %cst_24 = arith.constant 1.600000e+01 : f32
    %67 = vector.broadcast %cst_24 : f32 to vector<8x128xf32>
    %68 = arith.mulf %67, %29 : vector<8x128xf32>
    %69 = math.exp %68 : vector<8x128xf32>
    %70 = arith.mulf %66, %69 : vector<8x128xf32>
    %71 = arith.mulf %70, %60 : vector<8x128xf32>
    %c16_25 = arith.constant 16 : index
    %c0_26 = arith.constant 0 : index
    %72 = vector.load %arg3[%c16_25, %c0_26] : memref<64x128xf32, #tpu.memory_space<vmem>>, vector<8x128xf32>
    tpu.vector_store %arg3[%c16_25, %c0_26], %71 {strides = array<i32>} : memref<64x128xf32, #tpu.memory_space<vmem>>, vector<8x128xf32>,
    %73 = arith.mulf %70, %63 : vector<8x128xf32>
    %c48 = arith.constant 48 : index
    %c0_27 = arith.constant 0 : index
    %74 = vector.load %arg3[%c48, %c0_27] : memref<64x128xf32, #tpu.memory_space<vmem>>, vector<8x128xf32>
    tpu.vector_store %arg3[%c48, %c0_27], %73 {strides = array<i32>} : memref<64x128xf32, #tpu.memory_space<vmem>>, vector<8x128xf32>,
    %cst_28 = arith.constant 2.000000e+00 : f32
    %75 = vector.broadcast %cst_28 : f32 to vector<8x128xf32>
    %76 = arith.mulf %75, %60 : vector<8x128xf32>
    %77 = arith.mulf %76, %63 : vector<8x128xf32>
    %78 = arith.mulf %63, %63 : vector<8x128xf32>
    %79 = arith.mulf %60, %60 : vector<8x128xf32>
    %80 = arith.subf %78, %79 : vector<8x128xf32>
    %cst_29 = arith.constant -8.000000e+00 : f32
    %81 = vector.broadcast %cst_29 : f32 to vector<8x128xf32>
    %82 = arith.mulf %81, %27 : vector<8x128xf32>
    %83 = math.exp %82 : vector<8x128xf32>
    %cst_30 = arith.constant 6.400000e+01 : f32
    %84 = vector.broadcast %cst_30 : f32 to vector<8x128xf32>
    %85 = arith.mulf %84, %29 : vector<8x128xf32>
    %86 = math.exp %85 : vector<8x128xf32>
    %87 = arith.mulf %83, %86 : vector<8x128xf32>
    %88 = arith.mulf %87, %77 : vector<8x128xf32>
    %c24 = arith.constant 24 : index
    %c0_31 = arith.constant 0 : index
    %89 = vector.load %arg3[%c24, %c0_31] : memref<64x128xf32, #tpu.memory_space<vmem>>, vector<8x128xf32>
    tpu.vector_store %arg3[%c24, %c0_31], %88 {strides = array<i32>} : memref<64x128xf32, #tpu.memory_space<vmem>>, vector<8x128xf32>,
    %90 = arith.mulf %87, %80 : vector<8x128xf32>
    %c56 = arith.constant 56 : index
    %c0_32 = arith.constant 0 : index
    %91 = vector.load %arg3[%c56, %c0_32] : memref<64x128xf32, #tpu.memory_space<vmem>>, vector<8x128xf32>
    tpu.vector_store %arg3[%c56, %c0_32], %90 {strides = array<i32>} : memref<64x128xf32, #tpu.memory_space<vmem>>, vector<8x128xf32>,
    return
  }
  func.func @transform_0(%arg0: i32) -> (i32, i32) {
    %c0_i32 = arith.constant 0 : i32
    %c0_i32_0 = arith.constant 0 : i32
    return %c0_i32, %arg0 : i32, i32
  }
  func.func @transform_1(%arg0: i32) -> (i32, i32) {
    %c0_i32 = arith.constant 0 : i32
    %c0_i32_0 = arith.constant 0 : i32
    return %c0_i32, %arg0 : i32, i32
  }
  func.func @transform_2(%arg0: i32) -> (i32, i32) {
    %c0_i32 = arith.constant 0 : i32
    %c0_i32_0 = arith.constant 0 : i32
    return %c0_i32, %arg0 : i32, i32
  }
}

</mosaic_0001>

<llo_original>
// kernel: tpu_custom_call.1
$region0: #{tpu_custom_call.1}
  #allocation0 [shape = 'u32[]', space=smem, size = 0x4, offset = 0x4, fixed_abs, tag = 'smem constant byte address 0x4 - core index']
  #allocation1 [shape = 'u32[144,128]{1,0:T(1,128)}', space=vmem, size = 0x12000, scoped, tag = 'internal scratch']
  %s0 = inlined_call_operand.hbm [shape: f32[24,128], index: 0, kind: input, shape index: {}]
  %s1 = inlined_call_operand.hbm [shape: f32[8,128], index: 1, kind: input, shape index: {}]
  %s2 = inlined_call_operand.hbm [shape: f32[64,128], index: 2, kind: output, shape index: {}]
  %s3 = sld [smem:[#allocation0]]
  $region26: #{tpu_custom_call.1} parent=0
    _
  %s5 = ssub.s32 1, %s3
  %s6 = scalar_select 0, %s5, %s3
  $region1: #{tpu_custom_call.1} parent=0
    #allocation2 [shape = 'u8[12288]{0}', space=vmem, size = 0x3000, scoped, tag = 'input window, operand 0, single buffered']
    #allocation3 [shape = 's32[1]{0}', space=sflag, size = 0x4, scoped, tag = 'scoped memory for tpu_custom_call.1']
    #allocation4 [shape = 's32[1]{0}', space=sflag, size = 0x4, scoped, tag = 'scoped memory for tpu_custom_call.1']
    #allocation5 [shape = 'u8[4096]{0}', space=vmem, size = 0x1000, scoped, tag = 'input window, operand 1, single buffered']
    #allocation6 [shape = 's32[1]{0}', space=sflag, size = 0x4, scoped, tag = 'scoped memory for tpu_custom_call.1']
    #allocation7 [shape = 'u8[32768]{0}', space=vmem, size = 0x8000, scoped, tag = 'output window, operand 0, single buffered']
    %7 = vsyncpa [#allocation3], 0
    %8 = vsyncpa [#allocation6], 0
    %9 = vsyncpa [#allocation4], 0
    // Predicated region
    $region2: #{tpu_custom_call.1} parent=1 // pred_check
      _
    $region3: #{tpu_custom_call.1} parent=1 // pred_check_branch
      %11 = sbr.rel (0) target = $region5
    $region4: #{tpu_custom_call.1} parent=1 // pred_region
      %s13 = ssub.s32 384, 384
      %14 = vsyncadd [#allocation3], %s13
      %s15 = sshll.u32 [#allocation2], 4
      %s16 = int_to_ptr.vmem [resolvable:$true] %s15
      %21 = dma.hbm_to_vmem [thread:$0]  %s0, 384, %s16, [#allocation3], 128, 128, 8
    $region5: #{tpu_custom_call.1} parent=1 // pred_fallthru
      _
    // Predicated region
    $region6: #{tpu_custom_call.1} parent=1 // pred_check
      _
    $region7: #{tpu_custom_call.1} parent=1 // pred_check_branch
      %23 = sbr.rel (0) target = $region9
    $region8: #{tpu_custom_call.1} parent=1 // pred_region
      %s25 = ssub.s32 128, 128
      %26 = vsyncadd [#allocation6], %s25
      %s28 = sshll.u32 [#allocation5], 4
      %s29 = int_to_ptr.vmem [resolvable:$true] %s28
      %31 = dma.hbm_to_vmem [thread:$0]  %s1, 128, %s29, [#allocation6]
    $region9: #{tpu_custom_call.1} parent=1 // pred_fallthru
      _
    // Predicated region
    $region10: #{tpu_custom_call.1} parent=1 // pred_check
      _
    $region11: #{tpu_custom_call.1} parent=1 // pred_check_branch
      %33 = sbr.rel (0) target = $region13
    $region12: #{tpu_custom_call.1} parent=1 // pred_region
      %34 = dma.done [#allocation3], 384
    $region13: #{tpu_custom_call.1} parent=1 // pred_fallthru
      _
    // Predicated region
    $region14: #{tpu_custom_call.1} parent=1 // pred_check
      _
    $region15: #{tpu_custom_call.1} parent=1 // pred_check_branch
      %36 = sbr.rel (0) target = $region17
    $region16: #{tpu_custom_call.1} parent=1 // pred_region
      %37 = dma.done [#allocation6], 128
    $region17: #{tpu_custom_call.1} parent=1 // pred_fallthru
      _
    %v38 = vld [vmem:[#allocation2] sm:$0xff]
    %v39 = vld [vmem:[#allocation2 + $0x8] sm:$0xff]
    %v40 = vld [vmem:[#allocation2 + $0x10] sm:$0xff]
    %v41 = vld [vmem:[#allocation5] sm:$0xff]
    %v42 = vmul.f32 %v38, %v38
    %v43 = vmul.f32 %v39, %v39
    %v44 = vadd.f32 %v42, %v43
    %vm45 = vcmp.eq.f32.partialorder %v44, 0.0
    %v46 = vsel %vm45, 1.0, %v44
    %v47 = vrsqrt.pop %v46
    %v48 = vmul.f32 %v39, %v47
    %v49 = vsel %vm45, 0.0, %v48
    %v50 = vmul.f32 %v38, %v47
    %v51 = vsel %vm45, 1.0, %v50
    %v52 = vmul.f32 %v41, %v41
    %v53 = vadd.f32 %v52, 1e-08
    %v54 = vrcp.pop %v53
    %v55 = vmul.f32 %v53, %v54
    %v56 = vsub.f32 2.0, %v55
    %v57 = vmul.f32 %v54, %v56
    %v58 = vmul.f32 %v40, %v40
    %v59 = vmul.f32 %v58, %v58
    %v60 = vmul.f32 %v57, -0.5
    %v61 = vmul.f32 %v59, -1.0
    %v62 = vmul.f32 %v61, 1.442695
    %v63 = vpow.pop %v62
    %v64 = vmul.f32 %v60, 1.442695
    %v65 = vpow.pop %v64
    %v66 = vmul.f32 %v63, %v65
    %v67 = vmul.f32 %v66, %v49
    %68 = vst [vmem:[#allocation7] sm:$0xff] %v67
    %v69 = vmul.f32 %v66, %v51
    %70 = vst [vmem:[#allocation7 + $0x20] sm:$0xff] %v69
    %v71 = vmul.f32 %v49, 2.0
    %v72 = vmul.f32 %v71, %v51
    %v73 = vmul.f32 %v51, %v51
    %v74 = vmul.f32 %v49, %v49
    %v75 = vsub.f32 %v73, %v74
    %v76 = vmul.f32 %v59, -2.0
    %v77 = vmul.f32 %v76, 1.442695
    %v78 = vpow.pop %v77
    %v79 = vmul.f32 %v60, 4.0
    %v80 = vmul.f32 %v79, 1.442695
    %v81 = vpow.pop %v80
    %v82 = vmul.f32 %v78, %v81
    %v83 = vmul.f32 %v82, %v72
    %84 = vst [vmem:[#allocation7 + $0x8] sm:$0xff] %v83
    %v85 = vmul.f32 %v82, %v75
    %86 = vst [vmem:[#allocation7 + $0x28] sm:$0xff] %v85
    %v87 = vmul.f32 %v72, 2.0
    %v88 = vmul.f32 %v87, %v75
    %v89 = vmul.f32 %v75, %v75
    %v90 = vmul.f32 %v72, %v72
    %v91 = vsub.f32 %v89, %v90
    %v92 = vmul.f32 %v59, -4.0
    %v93 = vmul.f32 %v92, 1.442695
    %v94 = vpow.pop %v93
    %v95 = vmul.f32 %v60, 16.0
    %v96 = vmul.f32 %v95, 1.442695
    %v97 = vpow.pop %v96
    %v98 = vmul.f32 %v94, %v97
    %v99 = vmul.f32 %v98, %v88
    %100 = vst [vmem:[#allocation7 + $0x10] sm:$0xff] %v99
    %v101 = vmul.f32 %v98, %v91
    %102 = vst [vmem:[#allocation7 + $0x30] sm:$0xff] %v101
    %v103 = vmul.f32 %v88, 2.0
    %v104 = vmul.f32 %v103, %v91
    %v105 = vmul.f32 %v91, %v91
    %v106 = vmul.f32 %v88, %v88
    %v107 = vsub.f32 %v105, %v106
    %v108 = vmul.f32 %v59, -8.0
    %v109 = vmul.f32 %v108, 1.442695
    %v110 = vpow.pop %v109
    %v111 = vmul.f32 %v60, 64.0
    %v112 = vmul.f32 %v111, 1.442695
    %v113 = vpow.pop %v112
    %v114 = vmul.f32 %v110, %v113
    %v115 = vmul.f32 %v114, %v104
    %116 = vst [vmem:[#allocation7 + $0x18] sm:$0xff] %v115
    %v117 = vmul.f32 %v114, %v107
    %118 = vst [vmem:[#allocation7 + $0x38] sm:$0xff] %v117
    // Predicated region
    $region18: #{tpu_custom_call.1} parent=1 // pred_check
      _
    $region19: #{tpu_custom_call.1} parent=1 // pred_check_branch
      %120 = sbr.rel (0) target = $region21
    $region20: #{tpu_custom_call.1} parent=1 // pred_region
      %s122 = ssub.s32 1024, 1024
      %123 = vsyncadd [#allocation4], %s122
      %s124 = sshll.u32 [#allocation7], 4
      %s125 = int_to_ptr.vmem [resolvable:$true] %s124
      %130 = dma.vmem_to_hbm [thread:$0]  %s125, 1024, %s2, [#allocation4], 128, 128, 8
    $region21: #{tpu_custom_call.1} parent=1 // pred_fallthru
      _
    // Predicated region
    $region22: #{tpu_custom_call.1} parent=1 // pred_check
      _
    $region23: #{tpu_custom_call.1} parent=1 // pred_check_branch
      %132 = sbr.rel (0) target = $region25
    $region24: #{tpu_custom_call.1} parent=1 // pred_region
      %133 = dma.done [#allocation4], 1024
    $region25: #{tpu_custom_call.1} parent=1 // pred_fallthru
      _
    %134 = vsyncpa [#allocation3], 1
    %135 = vsyncpa [#allocation6], 1
    %136 = vsyncpa [#allocation4], 1

</llo_original>
